<compile_context>
chip_gen: v6e
topology: v6e:2x2x1
jax: 0.10.0
libtpu: 0.0.40
codegen_flags: <defaults>
</compile_context>

<pallas_src>
import functools

import jax
import jax.numpy as jnp
from jax.experimental import pallas as pl
from jax.experimental.pallas import tpu as pltpu


# ----------------------------------------------------------------------------
# Kernels
# ----------------------------------------------------------------------------

def _mixer_kernel_flat(w_ref, x_ref, o_ref, *, s_in, s_out, t, compute_dtype):
    """Batch-major path (lane-dense 2D blocks).

    w_ref: SMEM (s_out, s_in) f32 mixing weights (whole array, untiled).
    x_ref: VMEM (b_tile, s_in * t)   -- t % 128 == 0, so every slice below is
                                        a 128-aligned full-lane access.
    o_ref: VMEM (b_tile, s_out * t)
    """
    # Hoist the s_in loads / casts out of the s-loop: each source slice is
    # read & cast exactly once per block.
    xs = [x_ref[:, k * t:(k + 1) * t].astype(compute_dtype) for k in range(s_in)]
    for s in range(s_out):
        acc = w_ref[s, 0].astype(compute_dtype) * xs[0]
        for k in range(1, s_in):
            acc = acc + w_ref[s, k].astype(compute_dtype) * xs[k]
        o_ref[:, s * t:(s + 1) * t] = acc.astype(o_ref.dtype)


def _mixer_kernel_kgrid(w_ref, x_ref, o_ref, acc_ref, *, s_out):
    """Large-chunk path: contraction axis k on the innermost ("arbitrary")
    grid axis, time tiled as (ts, 128) so all tiles are dense vreg blocks.

    w_ref:   SMEM (s_out, s_in) f32.
    x_ref:   VMEM (b_tile, ts, 128)        -- k-th source slice (k squeezed).
    o_ref:   VMEM (b_tile, s_out, ts, 128) -- resident across k.
    acc_ref: VMEM (b_tile, s_out, ts, 128) f32 scratch accumulator.
    """
    k = pl.program_id(2)

    @pl.when(k == 0)
    def _():
        acc_ref[...] = jnp.zeros_like(acc_ref)

    xk = x_ref[...].astype(jnp.float32)
    for s in range(s_out):
        # w_ref[s, k]: cheap dynamic scalar read from SMEM.
        acc_ref[:, s, :, :] = acc_ref[:, s, :, :] + w_ref[s, k] * xk

    @pl.when(k == pl.num_programs(2) - 1)
    def _():
        o_ref[...] = acc_ref[...].astype(o_ref.dtype)


# ----------------------------------------------------------------------------
# Tiling / sizing helpers
# ----------------------------------------------------------------------------

def _vmem_budget():
    """Per-generation VMEM limit and per-block byte target."""
    vmem_cap = 128 << 20                      # v5e / v6e physical VMEM
    try:
        cap = getattr(pltpu.get_tpu_info(), "vmem_capacity_bytes", None)
        if cap:
            vmem_cap = int(cap)               # 64 MiB on v7x
    except Exception:
        pass
    vmem_limit = min(64 << 20, (vmem_cap * 3) // 4)   # ~48 MiB v7x, 64 MiB v5e/v6e
    target_bytes = max(1 << 20, min(8 << 20, vmem_limit // 8))
    return vmem_limit, target_bytes


def _compute_dtype(dtype):
    """bf16 math on v6e/v7x (bf16 VALU); f32 everywhere else (incl. v5e)."""
    if dtype == jnp.bfloat16:
        kind = ""
        try:
            kind = jax.devices()[0].device_kind.lower()
        except Exception:
            pass
        if ("v6" in kind) or ("v7" in kind):
            return jnp.bfloat16
    return jnp.float32


def _pick_batch_tile(B, row_bytes, target_bytes):
    """Rows per block for the batch-major path, or None if dense
    (multiple-of-8 / full-batch) sublane tiles can't be formed in budget."""
    max_rows = max(1, int(target_bytes // row_bytes))
    if max_rows >= B:
        # Whole batch fits one block. Still split large batches (~8 steps) for
        # pipeline overlap / megacore, keeping blocks >= ~1 MiB.
        if B >= 16 and (B // 8) * row_bytes >= (1 << 20):
            b_tile = max(8, (B // 8) // 8 * 8)
        else:
            return B                           # single full-batch block
    else:
        b_tile = max_rows
        if b_tile < 8:
            return None                        # would give ragged sublane blocks
        b_tile -= b_tile % 8                   # dense (8, .) sublane tiles
    # Prefer an exact divisor of B (no masked tail block).
    for cand in range(b_tile, 7, -8):
        if B % cand == 0:
            return cand
    return b_tile


# ----------------------------------------------------------------------------
# Forward wrapper
# ----------------------------------------------------------------------------

def mixer_mdx_forward(x, weight, num_sources, chunk_size):
    """out[b, s, t] = sum_k weight[s, k] * x[b, k, t].

    x: any shape with numel % ((num_sources+1)*chunk_size) == 0.
    weight: (num_sources, num_sources+1), same layout as nn.Linear.weight.
    Returns (B, num_sources, chunk_size).
    """
    s_in = num_sources + 1
    s_out = num_sources
    x3 = x.reshape(-1, s_in, chunk_size)
    B = x3.shape[0]
    dtype = x3.dtype
    itemsize = jnp.dtype(dtype).itemsize
    compute_dtype = _compute_dtype(dtype)
    vmem_limit, target_bytes = _vmem_budget()

    # Pad the time axis to a lane multiple so every in-kernel slice is a
    # 128-aligned full-vreg access (fixes the old chunk_size % 128 fallback).
    chunk_pad = -(-chunk_size // 128) * 128
    if chunk_pad != chunk_size:
        x3 = jnp.pad(x3, ((0, 0), (0, 0), (0, chunk_pad - chunk_size)))

    w32 = weight.astype(jnp.float32)          # tiny; read as scalars from SMEM
    cost = pl.CostEstimate(
        flops=2 * B * s_out * s_in * chunk_size,
        bytes_accessed=B * (s_in + s_out) * chunk_size * itemsize + s_out * s_in * 4,
        transcendentals=0)

    row_bytes = s_in * chunk_pad * itemsize
    b_tile = _pick_batch_tile(B, row_bytes, target_bytes) \
        if row_bytes <= target_bytes else None

    if b_tile is not None:
        # ---- Path A: lane-dense 2D batch-major blocks ------------------------
        t = chunk_pad
        x2 = x3.reshape(B, s_in * t)          # free, row-major contiguous
        grid = (pl.cdiv(B, b_tile),)
        out2 = pl.pallas_call(
            functools.partial(_mixer_kernel_flat, s_in=s_in, s_out=s_out, t=t,
                              compute_dtype=compute_dtype),
            out_shape=jax.ShapeDtypeStruct((B, s_out * t), dtype),
            grid=grid,
            in_specs=[
                pl.BlockSpec(memory_space=pltpu.MemorySpace.SMEM),     # weights
                pl.BlockSpec((b_tile, s_in * t), lambda b: (b, 0)),    # input slab
            ],
            out_specs=pl.BlockSpec((b_tile, s_out * t), lambda b: (b, 0)),
            compiler_params=pltpu.CompilerParams(
                dimension_semantics=("parallel",),
                vmem_limit_bytes=vmem_limit),
            cost_estimate=cost,
        )(w32, x2)
        out3 = out2.reshape(B, s_out, t)
    else:
        # ---- Path B: large chunks — contraction on the grid, time tiled ------
        # View the time axis as (n128, 128): pure reshape, gives dense
        # (multiple-of-8, 128) tiles instead of 1-sublane strips.
        n128 = chunk_pad // 128
        b_tile_b = 8 if B >= 8 else B
        # Size ts so 2x in + 2x out blocks + f32 accumulator stay well in VMEM.
        per_ts = b_tile_b * 128 * (2 * itemsize + 2 * s_out * itemsize + 4 * s_out)
        ts = max(8, min(512, int((vmem_limit // 2) // per_ts) // 8 * 8))
        if ts > n128:
            ts = max(8, (n128 // 8) * 8)

        x4 = x3.reshape(B, s_in, n128, 128)
        grid = (pl.cdiv(B, b_tile_b), pl.cdiv(n128, ts), s_in)
        out4 = pl.pallas_call(
            functools.partial(_mixer_kernel_kgrid, s_out=s_out),
            out_shape=jax.ShapeDtypeStruct((B, s_out, n128, 128), dtype),
            grid=grid,
            in_specs=[
                pl.BlockSpec(memory_space=pltpu.MemorySpace.SMEM),     # weights
                pl.BlockSpec((b_tile_b, pl.Squeezed(), ts, 128),
                             lambda b, t, k: (b, k, t, 0)),            # k-th source
            ],
            out_specs=pl.BlockSpec((b_tile_b, s_out, ts, 128),
                                   lambda b, t, k: (b, 0, t, 0)),      # k-resident
            scratch_shapes=[pltpu.VMEM((b_tile_b, s_out, ts, 128), jnp.float32)],
            compiler_params=pltpu.CompilerParams(
                dimension_semantics=("parallel", "parallel", "arbitrary"),
                vmem_limit_bytes=vmem_limit),
            cost_estimate=cost,
        )(w32, x4)
        out3 = out4.reshape(B, s_out, chunk_pad)

    if chunk_pad != chunk_size:
        out3 = out3[:, :, :chunk_size]
    return out3


def mixer_mdx_reference(x, weight, num_sources, chunk_size):
    x = x.reshape(-1, num_sources + 1, chunk_size)
    xt = jnp.swapaxes(x, -1, -2)                  # (B, T, S+1)
    y = xt @ weight.T.astype(x.dtype)             # (B, T, S)
    return jnp.swapaxes(y, -1, -2).reshape(-1, num_sources, chunk_size)


if __name__ == "__main__":
    num_sources = 4
    chunk_size = 512
    batch = 4

    key = jax.random.PRNGKey(0)
    kx, kw = jax.random.split(key)

    # Input reshapes to (batch, num_sources+1, chunk_size); weight matches
    # nn.Linear(num_sources+1, num_sources, bias=False).weight layout.
    x = jax.random.normal(kx, (batch, num_sources + 1, chunk_size),
                          dtype=jnp.float32)
    weight = jax.random.normal(kw, (num_sources, num_sources + 1),
                               dtype=jnp.float32) * 0.1

    out = jax.block_until_ready(
        mixer_mdx_forward(x, weight, num_sources, chunk_size))
    ref = mixer_mdx_reference(x, weight, num_sources, chunk_size)

    assert out.shape == (batch, num_sources, chunk_size), out.shape
    assert jnp.allclose(out, ref, atol=1e-5, rtol=1e-5), \
        float(jnp.max(jnp.abs(out - ref)))
    print("KERNEL_OK")
</pallas_src>

<mosaic_0001>
module attributes {stable_mosaic.version = 11 : i64} {
  func.func @_mixer_kernel_flat(%arg0: i32, %arg1: memref<4x5xf32, #tpu.memory_space<smem>>, %arg2: memref<4x2560xf32, #tpu.memory_space<vmem>>, %arg3: memref<4x2048xf32, #tpu.memory_space<vmem>>) attributes {dimension_semantics = [#tpu.dimension_semantics<parallel>], iteration_bounds = array<i64: 1>, scalar_prefetch = 0 : i64, scratch_operands = 0 : i64, tpu.core_type = #tpu.core_type<tc>, window_params = [{transform_indices = @transform_0, window_bounds = array<i64: 4, 5>}, {transform_indices = @transform_1, window_bounds = array<i64: 4, 2560>}, {transform_indices = @transform_2, window_bounds = array<i64: 4, 2048>}]} {
    %c0 = arith.constant 0 : index
    %c0_0 = arith.constant 0 : index
    %0 = vector.load %arg2[%c0, %c0_0] : memref<4x2560xf32, #tpu.memory_space<vmem>>, vector<4x512xf32>
    %c0_1 = arith.constant 0 : index
    %c512 = arith.constant 512 : index
    %1 = vector.load %arg2[%c0_1, %c512] : memref<4x2560xf32, #tpu.memory_space<vmem>>, vector<4x512xf32>
    %c0_2 = arith.constant 0 : index
    %c1024 = arith.constant 1024 : index
    %2 = vector.load %arg2[%c0_2, %c1024] : memref<4x2560xf32, #tpu.memory_space<vmem>>, vector<4x512xf32>
    %c0_3 = arith.constant 0 : index
    %c1536 = arith.constant 1536 : index
    %3 = vector.load %arg2[%c0_3, %c1536] : memref<4x2560xf32, #tpu.memory_space<vmem>>, vector<4x512xf32>
    %c0_4 = arith.constant 0 : index
    %c2048 = arith.constant 2048 : index
    %4 = vector.load %arg2[%c0_4, %c2048] : memref<4x2560xf32, #tpu.memory_space<vmem>>, vector<4x512xf32>
    %c0_5 = arith.constant 0 : index
    %c0_6 = arith.constant 0 : index
    %5 = memref.load %arg1[%c0_5, %c0_6] : memref<4x5xf32, #tpu.memory_space<smem>>
    %6 = vector.broadcast %5 : f32 to vector<4x512xf32>
    %7 = arith.mulf %6, %0 : vector<4x512xf32>
    %c0_7 = arith.constant 0 : index
    %c1 = arith.constant 1 : index
    %8 = memref.load %arg1[%c0_7, %c1] : memref<4x5xf32, #tpu.memory_space<smem>>
    %9 = vector.broadcast %8 : f32 to vector<4x512xf32>
    %10 = arith.mulf %9, %1 : vector<4x512xf32>
    %11 = arith.addf %7, %10 : vector<4x512xf32>
    %c0_8 = arith.constant 0 : index
    %c2 = arith.constant 2 : index
    %12 = memref.load %arg1[%c0_8, %c2] : memref<4x5xf32, #tpu.memory_space<smem>>
    %13 = vector.broadcast %12 : f32 to vector<4x512xf32>
    %14 = arith.mulf %13, %2 : vector<4x512xf32>
    %15 = arith.addf %11, %14 : vector<4x512xf32>
    %c0_9 = arith.constant 0 : index
    %c3 = arith.constant 3 : index
    %16 = memref.load %arg1[%c0_9, %c3] : memref<4x5xf32, #tpu.memory_space<smem>>
    %17 = vector.broadcast %16 : f32 to vector<4x512xf32>
    %18 = arith.mulf %17, %3 : vector<4x512xf32>
    %19 = arith.addf %15, %18 : vector<4x512xf32>
    %c0_10 = arith.constant 0 : index
    %c4 = arith.constant 4 : index
    %20 = memref.load %arg1[%c0_10, %c4] : memref<4x5xf32, #tpu.memory_space<smem>>
    %21 = vector.broadcast %20 : f32 to vector<4x512xf32>
    %22 = arith.mulf %21, %4 : vector<4x512xf32>
    %23 = arith.addf %19, %22 : vector<4x512xf32>
    %c0_11 = arith.constant 0 : index
    %c0_12 = arith.constant 0 : index
    %24 = vector.load %arg3[%c0_11, %c0_12] : memref<4x2048xf32, #tpu.memory_space<vmem>>, vector<4x512xf32>
    tpu.vector_store %arg3[%c0_11, %c0_12], %23 {strides = array<i32>} : memref<4x2048xf32, #tpu.memory_space<vmem>>, vector<4x512xf32>,
    %c1_13 = arith.constant 1 : index
    %c0_14 = arith.constant 0 : index
    %25 = memref.load %arg1[%c1_13, %c0_14] : memref<4x5xf32, #tpu.memory_space<smem>>
    %26 = vector.broadcast %25 : f32 to vector<4x512xf32>
    %27 = arith.mulf %26, %0 : vector<4x512xf32>
    %c1_15 = arith.constant 1 : index
    %c1_16 = arith.constant 1 : index
    %28 = memref.load %arg1[%c1_15, %c1_16] : memref<4x5xf32, #tpu.memory_space<smem>>
    %29 = vector.broadcast %28 : f32 to vector<4x512xf32>
    %30 = arith.mulf %29, %1 : vector<4x512xf32>
    %31 = arith.addf %27, %30 : vector<4x512xf32>
    %c1_17 = arith.constant 1 : index
    %c2_18 = arith.constant 2 : index
    %32 = memref.load %arg1[%c1_17, %c2_18] : memref<4x5xf32, #tpu.memory_space<smem>>
    %33 = vector.broadcast %32 : f32 to vector<4x512xf32>
    %34 = arith.mulf %33, %2 : vector<4x512xf32>
    %35 = arith.addf %31, %34 : vector<4x512xf32>
    %c1_19 = arith.constant 1 : index
    %c3_20 = arith.constant 3 : index
    %36 = memref.load %arg1[%c1_19, %c3_20] : memref<4x5xf32, #tpu.memory_space<smem>>
    %37 = vector.broadcast %36 : f32 to vector<4x512xf32>
    %38 = arith.mulf %37, %3 : vector<4x512xf32>
    %39 = arith.addf %35, %38 : vector<4x512xf32>
    %c1_21 = arith.constant 1 : index
    %c4_22 = arith.constant 4 : index
    %40 = memref.load %arg1[%c1_21, %c4_22] : memref<4x5xf32, #tpu.memory_space<smem>>
    %41 = vector.broadcast %40 : f32 to vector<4x512xf32>
    %42 = arith.mulf %41, %4 : vector<4x512xf32>
    %43 = arith.addf %39, %42 : vector<4x512xf32>
    %c0_23 = arith.constant 0 : index
    %c512_24 = arith.constant 512 : index
    %44 = vector.load %arg3[%c0_23, %c512_24] : memref<4x2048xf32, #tpu.memory_space<vmem>>, vector<4x512xf32>
    tpu.vector_store %arg3[%c0_23, %c512_24], %43 {strides = array<i32>} : memref<4x2048xf32, #tpu.memory_space<vmem>>, vector<4x512xf32>,
    %c2_25 = arith.constant 2 : index
    %c0_26 = arith.constant 0 : index
    %45 = memref.load %arg1[%c2_25, %c0_26] : memref<4x5xf32, #tpu.memory_space<smem>>
    %46 = vector.broadcast %45 : f32 to vector<4x512xf32>
    %47 = arith.mulf %46, %0 : vector<4x512xf32>
    %c2_27 = arith.constant 2 : index
    %c1_28 = arith.constant 1 : index
    %48 = memref.load %arg1[%c2_27, %c1_28] : memref<4x5xf32, #tpu.memory_space<smem>>
    %49 = vector.broadcast %48 : f32 to vector<4x512xf32>
    %50 = arith.mulf %49, %1 : vector<4x512xf32>
    %51 = arith.addf %47, %50 : vector<4x512xf32>
    %c2_29 = arith.constant 2 : index
    %c2_30 = arith.constant 2 : index
    %52 = memref.load %arg1[%c2_29, %c2_30] : memref<4x5xf32, #tpu.memory_space<smem>>
    %53 = vector.broadcast %52 : f32 to vector<4x512xf32>
    %54 = arith.mulf %53, %2 : vector<4x512xf32>
    %55 = arith.addf %51, %54 : vector<4x512xf32>
    %c2_31 = arith.constant 2 : index
    %c3_32 = arith.constant 3 : index
    %56 = memref.load %arg1[%c2_31, %c3_32] : memref<4x5xf32, #tpu.memory_space<smem>>
    %57 = vector.broadcast %56 : f32 to vector<4x512xf32>
    %58 = arith.mulf %57, %3 : vector<4x512xf32>
    %59 = arith.addf %55, %58 : vector<4x512xf32>
    %c2_33 = arith.constant 2 : index
    %c4_34 = arith.constant 4 : index
    %60 = memref.load %arg1[%c2_33, %c4_34] : memref<4x5xf32, #tpu.memory_space<smem>>
    %61 = vector.broadcast %60 : f32 to vector<4x512xf32>
    %62 = arith.mulf %61, %4 : vector<4x512xf32>
    %63 = arith.addf %59, %62 : vector<4x512xf32>
    %c0_35 = arith.constant 0 : index
    %c1024_36 = arith.constant 1024 : index
    %64 = vector.load %arg3[%c0_35, %c1024_36] : memref<4x2048xf32, #tpu.memory_space<vmem>>, vector<4x512xf32>
    tpu.vector_store %arg3[%c0_35, %c1024_36], %63 {strides = array<i32>} : memref<4x2048xf32, #tpu.memory_space<vmem>>, vector<4x512xf32>,
    %c3_37 = arith.constant 3 : index
    %c0_38 = arith.constant 0 : index
    %65 = memref.load %arg1[%c3_37, %c0_38] : memref<4x5xf32, #tpu.memory_space<smem>>
    %66 = vector.broadcast %65 : f32 to vector<4x512xf32>
    %67 = arith.mulf %66, %0 : vector<4x512xf32>
    %c3_39 = arith.constant 3 : index
    %c1_40 = arith.constant 1 : index
    %68 = memref.load %arg1[%c3_39, %c1_40] : memref<4x5xf32, #tpu.memory_space<smem>>
    %69 = vector.broadcast %68 : f32 to vector<4x512xf32>
    %70 = arith.mulf %69, %1 : vector<4x512xf32>
    %71 = arith.addf %67, %70 : vector<4x512xf32>
    %c3_41 = arith.constant 3 : index
    %c2_42 = arith.constant 2 : index
    %72 = memref.load %arg1[%c3_41, %c2_42] : memref<4x5xf32, #tpu.memory_space<smem>>
    %73 = vector.broadcast %72 : f32 to vector<4x512xf32>
    %74 = arith.mulf %73, %2 : vector<4x512xf32>
    %75 = arith.addf %71, %74 : vector<4x512xf32>
    %c3_43 = arith.constant 3 : index
    %c3_44 = arith.constant 3 : index
    %76 = memref.load %arg1[%c3_43, %c3_44] : memref<4x5xf32, #tpu.memory_space<smem>>
    %77 = vector.broadcast %76 : f32 to vector<4x512xf32>
    %78 = arith.mulf %77, %3 : vector<4x512xf32>
    %79 = arith.addf %75, %78 : vector<4x512xf32>
    %c3_45 = arith.constant 3 : index
    %c4_46 = arith.constant 4 : index
    %80 = memref.load %arg1[%c3_45, %c4_46] : memref<4x5xf32, #tpu.memory_space<smem>>
    %81 = vector.broadcast %80 : f32 to vector<4x512xf32>
    %82 = arith.mulf %81, %4 : vector<4x512xf32>
    %83 = arith.addf %79, %82 : vector<4x512xf32>
    %c0_47 = arith.constant 0 : index
    %c1536_48 = arith.constant 1536 : index
    %84 = vector.load %arg3[%c0_47, %c1536_48] : memref<4x2048xf32, #tpu.memory_space<vmem>>, vector<4x512xf32>
    tpu.vector_store %arg3[%c0_47, %c1536_48], %83 {strides = array<i32>} : memref<4x2048xf32, #tpu.memory_space<vmem>>, vector<4x512xf32>,
    return
  }
  func.func @transform_0(%arg0: i32) -> (i32, i32) {
    %c0_i32 = arith.constant 0 : i32
    %c0_i32_0 = arith.constant 0 : i32
    %c0_i32_1 = arith.constant 0 : i32
    return %c0_i32, %c0_i32_0 : i32, i32
  }
  func.func @transform_1(%arg0: i32) -> (i32, i32) {
    %c0_i32 = arith.constant 0 : i32
    %c0_i32_0 = arith.constant 0 : i32
    return %arg0, %c0_i32 : i32, i32
  }
  func.func @transform_2(%arg0: i32) -> (i32, i32) {
    %c0_i32 = arith.constant 0 : i32
    %c0_i32_0 = arith.constant 0 : i32
    return %arg0, %c0_i32 : i32, i32
  }
}

</mosaic_0001>

<llo_original>
// kernel: tpu_custom_call.1
$region0: #{tpu_custom_call.1}
  #allocation0 [shape = 'u32[]', space=smem, size = 0x4, offset = 0x4, fixed_abs, tag = 'smem constant byte address 0x4 - core index']
  #allocation1 [shape = 'u32[144,128]{1,0:T(1,128)}', space=vmem, size = 0x12000, scoped, tag = 'internal scratch']
  %s0 = inlined_call_operand.hbm [shape: f32[4,5], index: 0, kind: input, shape index: {}]
  %s1 = inlined_call_operand.hbm [shape: f32[4,2560], index: 1, kind: input, shape index: {}]
  %s2 = inlined_call_operand.hbm [shape: f32[4,2048], index: 2, kind: output, shape index: {}]
  %s3 = sld [smem:[#allocation0]]
  $region26: #{tpu_custom_call.1} parent=0
    _
  %s5 = ssub.s32 1, %s3
  %s6 = scalar_select 0, %s5, %s3
  $region1: #{tpu_custom_call.1} parent=0
    #allocation2 [shape = 'u8[2048]{0}', space=smem, size = 0x800, scoped, tag = 'input window, operand 0, single buffered']
    #allocation3 [shape = 's32[1]{0}', space=sflag, size = 0x4, scoped, tag = 'scoped memory for tpu_custom_call.1']
    #allocation4 [shape = 's32[1]{0}', space=sflag, size = 0x4, scoped, tag = 'scoped memory for tpu_custom_call.1']
    #allocation5 [shape = 's32[1]{0}', space=sflag, size = 0x4, scoped, tag = 'scoped memory for tpu_custom_call.1']
    #allocation6 [shape = 'u8[40960]{0}', space=vmem, size = 0xa000, scoped, tag = 'input window, operand 1, single buffered']
    #allocation7 [shape = 'u8[32768]{0}', space=vmem, size = 0x8000, scoped, tag = 'output window, operand 0, single buffered']
    %7 = vsyncpa [#allocation5], 0
    %8 = vsyncpa [#allocation3], 0
    %9 = vsyncpa [#allocation4], 0
    // Predicated region
    $region2: #{tpu_custom_call.1} parent=1 // pred_check
      _
    $region3: #{tpu_custom_call.1} parent=1 // pred_check_branch
      %11 = sbr.rel (0) target = $region5
    $region4: #{tpu_custom_call.1} parent=1 // pred_region
      %s13 = ssub.s32 64, 64
      %14 = vsyncadd [#allocation5], %s13
      %17 = dma.hbm_to_smem %s0, 64, [#allocation2], [#allocation5]
    $region5: #{tpu_custom_call.1} parent=1 // pred_fallthru
      _
    // Predicated region
    $region6: #{tpu_custom_call.1} parent=1 // pred_check
      _
    $region7: #{tpu_custom_call.1} parent=1 // pred_check_branch
      %19 = sbr.rel (0) target = $region9
    $region8: #{tpu_custom_call.1} parent=1 // pred_region
      %s21 = ssub.s32 1280, 1280
      %22 = vsyncadd [#allocation3], %s21
      %s24 = sshll.u32 [#allocation6], 4
      %s25 = int_to_ptr.vmem [resolvable:$true] %s24
      %27 = dma.hbm_to_vmem [thread:$0]  %s1, 1280, %s25, [#allocation3]
    $region9: #{tpu_custom_call.1} parent=1 // pred_fallthru
      _
    // Predicated region
    $region10: #{tpu_custom_call.1} parent=1 // pred_check
      _
    $region11: #{tpu_custom_call.1} parent=1 // pred_check_branch
      %29 = sbr.rel (0) target = $region13
    $region12: #{tpu_custom_call.1} parent=1 // pred_region
      %30 = dma.done [#allocation5], 64
    $region13: #{tpu_custom_call.1} parent=1 // pred_fallthru
      _
    // Predicated region
    $region14: #{tpu_custom_call.1} parent=1 // pred_check
      _
    $region15: #{tpu_custom_call.1} parent=1 // pred_check_branch
      %32 = sbr.rel (0) target = $region17
    $region16: #{tpu_custom_call.1} parent=1 // pred_region
      %33 = dma.done [#allocation3], 1280
    $region17: #{tpu_custom_call.1} parent=1 // pred_fallthru
      _
    %34 = sfence
    %v35 = vld [vmem:[#allocation6] sm:$0xff]
    %v36 = vld [vmem:[#allocation6 + $0x8] sm:$0xff]
    %v37 = vld [vmem:[#allocation6 + $0x10] sm:$0xff]
    %v38 = vld [vmem:[#allocation6 + $0x18] sm:$0xff]
    %v39 = vld [vmem:[#allocation6 + $0x20] sm:$0xff]
    %v40 = vld [vmem:[#allocation6 + $0x28] sm:$0xff]
    %v41 = vld [vmem:[#allocation6 + $0x30] sm:$0xff]
    %v42 = vld [vmem:[#allocation6 + $0x38] sm:$0xff]
    %v43 = vld [vmem:[#allocation6 + $0x40] sm:$0xff]
    %v44 = vld [vmem:[#allocation6 + $0x48] sm:$0xff]
    %s45 = sld [smem:[#allocation2]]
    %v46 = vstv %s45
    %v47 = vmul.f32 %v46, %v35
    %v48 = vmul.f32 %v46, %v36
    %s49 = sld [smem:[#allocation2 + $0x1]]
    %v50 = vstv %s49
    %v51 = vmul.f32 %v50, %v37
    %v52 = vmul.f32 %v50, %v38
    %v53 = vadd.f32 %v47, %v51
    %v54 = vadd.f32 %v48, %v52
    %s55 = sld [smem:[#allocation2 + $0x2]]
    %v56 = vstv %s55
    %v57 = vmul.f32 %v56, %v39
    %v58 = vmul.f32 %v56, %v40
    %v59 = vadd.f32 %v53, %v57
    %v60 = vadd.f32 %v54, %v58
    %s61 = sld [smem:[#allocation2 + $0x3]]
    %v62 = vstv %s61
    %v63 = vmul.f32 %v62, %v41
    %v64 = vmul.f32 %v62, %v42
    %v65 = vadd.f32 %v59, %v63
    %v66 = vadd.f32 %v60, %v64
    %s67 = sld [smem:[#allocation2 + $0x4]]
    %v68 = vstv %s67
    %v69 = vmul.f32 %v68, %v43
    %v70 = vmul.f32 %v68, %v44
    %v71 = vadd.f32 %v65, %v69
    %v72 = vadd.f32 %v66, %v70
    %73 = vst [vmem:[#allocation7] sm:$0xff] %v71
    %74 = vst [vmem:[#allocation7 + $0x8] sm:$0xff] %v72
    %s75 = sld [smem:[#allocation2 + $0x80]]
    %v76 = vstv %s75
    %v77 = vmul.f32 %v76, %v35
    %v78 = vmul.f32 %v76, %v36
    %s79 = sld [smem:[#allocation2 + $0x81]]
    %v80 = vstv %s79
    %v81 = vmul.f32 %v80, %v37
    %v82 = vmul.f32 %v80, %v38
    %v83 = vadd.f32 %v77, %v81
    %v84 = vadd.f32 %v78, %v82
    %s85 = sld [smem:[#allocation2 + $0x82]]
    %v86 = vstv %s85
    %v87 = vmul.f32 %v86, %v39
    %v88 = vmul.f32 %v86, %v40
    %v89 = vadd.f32 %v83, %v87
    %v90 = vadd.f32 %v84, %v88
    %s91 = sld [smem:[#allocation2 + $0x83]]
    %v92 = vstv %s91
    %v93 = vmul.f32 %v92, %v41
    %v94 = vmul.f32 %v92, %v42
    %v95 = vadd.f32 %v89, %v93
    %v96 = vadd.f32 %v90, %v94
    %s97 = sld [smem:[#allocation2 + $0x84]]
    %v98 = vstv %s97
    %v99 = vmul.f32 %v98, %v43
    %v100 = vmul.f32 %v98, %v44
    %v101 = vadd.f32 %v95, %v99
    %v102 = vadd.f32 %v96, %v100
    %103 = vst [vmem:[#allocation7 + $0x10] sm:$0xff] %v101
    %104 = vst [vmem:[#allocation7 + $0x18] sm:$0xff] %v102
    %s105 = sld [smem:[#allocation2 + $0x100]]
    %v106 = vstv %s105
    %v107 = vmul.f32 %v106, %v35
    %v108 = vmul.f32 %v106, %v36
    %s109 = sld [smem:[#allocation2 + $0x101]]
    %v110 = vstv %s109
    %v111 = vmul.f32 %v110, %v37
    %v112 = vmul.f32 %v110, %v38
    %v113 = vadd.f32 %v107, %v111
    %v114 = vadd.f32 %v108, %v112
    %s115 = sld [smem:[#allocation2 + $0x102]]
    %v116 = vstv %s115
    %v117 = vmul.f32 %v116, %v39
    %v118 = vmul.f32 %v116, %v40
    %v119 = vadd.f32 %v113, %v117
    %v120 = vadd.f32 %v114, %v118
    %s121 = sld [smem:[#allocation2 + $0x103]]
    %v122 = vstv %s121
    %v123 = vmul.f32 %v122, %v41
    %v124 = vmul.f32 %v122, %v42
    %v125 = vadd.f32 %v119, %v123
    %v126 = vadd.f32 %v120, %v124
    %s127 = sld [smem:[#allocation2 + $0x104]]
    %v128 = vstv %s127
    %v129 = vmul.f32 %v128, %v43
    %v130 = vmul.f32 %v128, %v44
    %v131 = vadd.f32 %v125, %v129
    %v132 = vadd.f32 %v126, %v130
    %133 = vst [vmem:[#allocation7 + $0x20] sm:$0xff] %v131
    %134 = vst [vmem:[#allocation7 + $0x28] sm:$0xff] %v132
    %s135 = sld [smem:[#allocation2 + $0x180]]
    %v136 = vstv %s135
    %v137 = vmul.f32 %v136, %v35
    %v138 = vmul.f32 %v136, %v36
    %s139 = sld [smem:[#allocation2 + $0x181]]
    %v140 = vstv %s139
    %v141 = vmul.f32 %v140, %v37
    %v142 = vmul.f32 %v140, %v38
    %v143 = vadd.f32 %v137, %v141
    %v144 = vadd.f32 %v138, %v142
    %s145 = sld [smem:[#allocation2 + $0x182]]
    %v146 = vstv %s145
    %v147 = vmul.f32 %v146, %v39
    %v148 = vmul.f32 %v146, %v40
    %v149 = vadd.f32 %v143, %v147
    %v150 = vadd.f32 %v144, %v148
    %s151 = sld [smem:[#allocation2 + $0x183]]
    %v152 = vstv %s151
    %v153 = vmul.f32 %v152, %v41
    %v154 = vmul.f32 %v152, %v42
    %v155 = vadd.f32 %v149, %v153
    %v156 = vadd.f32 %v150, %v154
    %s157 = sld [smem:[#allocation2 + $0x184]]
    %v158 = vstv %s157
    %v159 = vmul.f32 %v158, %v43
    %v160 = vmul.f32 %v158, %v44
    %v161 = vadd.f32 %v155, %v159
    %v162 = vadd.f32 %v156, %v160
    %163 = vst [vmem:[#allocation7 + $0x30] sm:$0xff] %v161
    %164 = vst [vmem:[#allocation7 + $0x38] sm:$0xff] %v162
    // Predicated region
    $region18: #{tpu_custom_call.1} parent=1 // pred_check
      _
    $region19: #{tpu_custom_call.1} parent=1 // pred_check_branch
      %166 = sbr.rel (0) target = $region21
    $region20: #{tpu_custom_call.1} parent=1 // pred_region
      %s168 = ssub.s32 1024, 1024
      %169 = vsyncadd [#allocation4], %s168
      %s171 = sshll.u32 [#allocation7], 4
      %s172 = int_to_ptr.vmem [resolvable:$true] %s171
      %174 = dma.vmem_to_hbm [thread:$0]  %s172, 1024, %s2, [#allocation4]
    $region21: #{tpu_custom_call.1} parent=1 // pred_fallthru
      _
    // Predicated region
    $region22: #{tpu_custom_call.1} parent=1 // pred_check
      _
    $region23: #{tpu_custom_call.1} parent=1 // pred_check_branch
      %176 = sbr.rel (0) target = $region25
    $region24: #{tpu_custom_call.1} parent=1 // pred_region
      %177 = dma.done [#allocation4], 1024
    $region25: #{tpu_custom_call.1} parent=1 // pred_fallthru
      _
    %178 = vsyncpa [#allocation3], 1
    %179 = vsyncpa [#allocation4], 1
    %180 = vsyncpa [#allocation5], 1

</llo_original>
